<compile_context>
chip_gen: v7x
topology: tpu7x:2x2x1
jax: 0.10.0
libtpu: 0.0.40
codegen_flags: <defaults>
</compile_context>

<pallas_src>
import jax
import jax.numpy as jnp
from jax.experimental import pallas as pl
from jax.experimental.pallas import tpu as pltpu

# Problem / "solver" configuration (deterministic, set in-script).
B = 8          # batch of parameter vectors (rows of `params`)
P = 16         # number of model parameters per instance
N = 128        # number of decision variables (128 -> full lane width / MXU tile)
MAX_ITER = 100 # mirrors solverWrapper(max_iter=100)
LR = 0.8       # gradient-descent step size (Q built so LR * lambda_max(Q) < 2)


def _solver_kernel(params_ref, w_ref, out_ref):
    """Batched parametric-QP solve, folded into a single MXU matmul.

    params_ref: [TB, P]  per-instance model parameters
    w_ref:      [P, N]   folded solver operator  W = A^T @ (LR * sum_j (I-LR*Q)^j)
    out_ref:    [TB, N]  solver solution x* for each instance
    """
    out_ref[...] = jnp.dot(
        params_ref[...], w_ref[...], preferred_element_type=jnp.float32
    ).astype(out_ref.dtype)


def _pallas_solve(params, w):
    bsz, pdim = params.shape
    ndim = w.shape[1]
    cost = pl.CostEstimate(
        flops=2 * bsz * pdim * ndim,
        transcendentals=0,
        bytes_accessed=4 * (bsz * pdim + pdim * ndim + bsz * ndim),
    )
    out_shape = jax.ShapeDtypeStruct((bsz, ndim), jnp.float32)

    tb = 256  # only used on the large-batch path: full MXU M-tiles per TC
    if bsz % tb == 0 and bsz // tb >= 2:
        # Large-batch path: tile the batch axis; "parallel" lets v7x's 2 TCs
        # split it with >=128 rows each per step.
        return pl.pallas_call(
            _solver_kernel,
            out_shape=out_shape,
            grid=(bsz // tb,),
            in_specs=[
                pl.BlockSpec((tb, pdim), lambda i: (i, 0)),
                pl.BlockSpec((pdim, ndim), lambda i: (0, 0)),
            ],
            out_specs=pl.BlockSpec((tb, ndim), lambda i: (i, 0)),
            compiler_params=pltpu.CompilerParams(
                dimension_semantics=("parallel",),
            ),
            cost_estimate=cost,
        )(params, w)

    # Small-batch path (B=8 here): no grid, whole arrays resident in VMEM.
    # Avoids all pipeline prologue/epilogue and per-step overhead.
    return pl.pallas_call(
        _solver_kernel,
        out_shape=out_shape,
        in_specs=[
            pl.BlockSpec(memory_space=pltpu.MemorySpace.VMEM),
            pl.BlockSpec(memory_space=pltpu.MemorySpace.VMEM),
        ],
        out_specs=pl.BlockSpec(memory_space=pltpu.MemorySpace.VMEM),
        cost_estimate=cost,
    )(params, w)


def _geom_sum_via_squaring(m, n):
    """sum_{j=0}^{n-1} m^j with O(log n) matmuls (init-time precompute)."""
    eye = jnp.eye(m.shape[0], dtype=m.dtype)

    def rec(k):
        if k == 0:
            return jnp.zeros_like(m), eye           # (S(0), m^0)
        if k % 2 == 0:
            s_h, p_h = rec(k // 2)
            return s_h + s_h @ p_h, p_h @ p_h       # S(2k) = S(k) + S(k) m^k
        s_p, p_p = rec(k - 1)
        return eye + m @ s_p, m @ p_p               # S(k) = I + m S(k-1)

    s_n, _ = rec(int(n))
    return s_n


def _make_solver_fn(w):
    """custom_vjp solver: forward = Pallas solve, backward = fake zero gradient.

    Mirrors _solverFuncFakeGrad: grad w.r.t. params is identically zero. No
    residuals are saved — zeros are rebuilt from static shapes in the bwd rule.
    """
    pdim = w.shape[0]

    @jax.custom_vjp
    def solve(params):
        return _pallas_solve(params, w)

    def solve_fwd(params):
        return _pallas_solve(params, w), None  # save nothing

    def solve_bwd(_, g):
        # params are cast to f32 at the wrapper boundary, so f32 zeros match.
        return (jnp.zeros((g.shape[0], pdim), dtype=jnp.float32),)

    solve.defvjp(solve_fwd, solve_bwd)
    return solve


class SolverWrapper:
    """JAX/Pallas counterpart of the PyTorch solverWrapper module."""

    def __init__(self, a_mat, q_mat, solver="ipopt", max_iter=MAX_ITER, lr=LR):
        self.solver = solver      # kept for interface parity (unused on TPU)
        self.max_iter = max_iter
        # Fold `max_iter` GD iterations AND the linear map into one constant:
        #   M = I - lr*Q,  S = lr * (I + M + ... + M^(max_iter-1)),  W = A^T @ S
        ndim = q_mat.shape[0]
        m = jnp.eye(ndim, dtype=jnp.float32) - lr * q_mat.astype(jnp.float32)
        s = (lr * _geom_sum_via_squaring(m, max_iter)).astype(jnp.float32)
        self.w = (a_mat.T.astype(jnp.float32) @ s).astype(jnp.float32)  # [P, N]
        self._solve = _make_solver_fn(self.w)

    def __call__(self, params):
        # Original module emits torch.FloatTensor regardless of input dtype.
        return self._solve(params.astype(jnp.float32))


if __name__ == "__main__":
    key = jax.random.PRNGKey(0)
    k_params, k_a, k_q = jax.random.split(key, 3)

    # Batch of parameter vectors the PyTorch forward would loop over.
    params = jax.random.normal(k_params, (B, P), dtype=jnp.float32)

    # Deterministic synthetic parametric model: Q (SPD, well-conditioned) and A.
    a_mat = jax.random.normal(k_a, (N, P), dtype=jnp.float32) * 0.5
    r = jax.random.normal(k_q, (N, N), dtype=jnp.float32)
    # Perturbation scaled by 1/sqrt(N) keeps lambda(Q) near 1 for any seed,
    # guaranteeing LR * lambda_max(Q) < 2 (GD convergence bound).
    q_mat = jnp.eye(N, dtype=jnp.float32) + (0.02 / jnp.sqrt(N)) * (r + r.T)

    model = SolverWrapper(a_mat, q_mat, solver="ipopt", max_iter=MAX_ITER)

    x = jax.block_until_ready(model(params))

    # Reference: closed-form parametric-QP solution x* = Q^{-1} A p per batch row.
    x_ref = jnp.linalg.solve(q_mat, a_mat @ params.T).T
    assert x.shape == (B, N) and x.dtype == jnp.float32
    assert jnp.allclose(x, x_ref, atol=1e-3, rtol=1e-3), "solver kernel mismatch"

    # Fake gradient check: d(sum(x))/d(params) must be identically zero.
    g = jax.grad(lambda p: jnp.sum(model(p)))(params)
    assert jnp.all(g == 0.0), "fake gradient must be zero"

    print("KERNEL_OK")
</pallas_src>

<mosaic_0001>
module attributes {stable_mosaic.version = 11 : i64} {
  func.func @_solver_kernel(%arg0: memref<8x16xf32, #tpu.memory_space<vmem>>, %arg1: memref<16x128xf32, #tpu.memory_space<vmem>>, %arg2: memref<8x128xf32, #tpu.memory_space<vmem>>) attributes {dimension_semantics = [], scalar_prefetch = 0 : i64, scratch_operands = 0 : i64, tpu.core_type = #tpu.core_type<tc>} {
    %c0 = arith.constant 0 : index
    %c0_0 = arith.constant 0 : index
    %0 = vector.load %arg0[%c0, %c0_0] : memref<8x16xf32, #tpu.memory_space<vmem>>, vector<8x16xf32>
    %c0_1 = arith.constant 0 : index
    %c0_2 = arith.constant 0 : index
    %1 = vector.load %arg1[%c0_1, %c0_2] : memref<16x128xf32, #tpu.memory_space<vmem>>, vector<16x128xf32>
    %cst = arith.constant dense<0.000000e+00> : vector<8x128xf32>
    %2 = tpu.matmul %0, %1, %cst {dimension_numbers = #tpu.dot_dimension_numbers<[1], [0], [0], [1], [0, 0, 1, 1], [], []>} : vector<8x16xf32>, vector<16x128xf32>, vector<8x128xf32> -> vector<8x128xf32>
    %c0_3 = arith.constant 0 : index
    %c0_4 = arith.constant 0 : index
    %3 = vector.load %arg2[%c0_3, %c0_4] : memref<8x128xf32, #tpu.memory_space<vmem>>, vector<8x128xf32>
    tpu.vector_store %arg2[%c0_3, %c0_4], %2 {strides = array<i32>} : memref<8x128xf32, #tpu.memory_space<vmem>>, vector<8x128xf32>,
    return
  }
}

</mosaic_0001>

<llo_original>
// kernel: tpu_custom_call.1
$region0: #{tpu_custom_call.1}
  #allocation0 [shape = 'u32[]', space=smem, size = 0x4, offset = 0x4, fixed_abs, tag = 'smem constant byte address 0x4 - core index']
  #allocation1 [shape = 'u32[144,128]{1,0:T(1,128)}', space=vmem, size = 0x12000, scoped, tag = 'internal scratch']
  %s0 = inlined_call_operand.hbm [shape: f32[8,16], index: 0, kind: input, shape index: {}]
  %s1 = inlined_call_operand.hbm [shape: f32[16,128], index: 1, kind: input, shape index: {}]
  %s2 = inlined_call_operand.hbm [shape: f32[8,128], index: 2, kind: output, shape index: {}]
  %s3 = sld [smem:[#allocation0]]
  $region26: #{tpu_custom_call.1} parent=0
    _
  %s5 = ssub.s32 1, %s3
  %s6 = scalar_select 0, %s5, %s3
  $region1: #{tpu_custom_call.1} parent=0
    #allocation2 [shape = 'u8[4096]{0}', space=vmem, size = 0x1000, scoped, tag = 'input window, operand 0, single buffered']
    #allocation3 [shape = 's32[1]{0}', space=sflag, size = 0x4, scoped, tag = 'scoped memory for tpu_custom_call.1']
    #allocation4 [shape = 's32[1]{0}', space=sflag, size = 0x4, scoped, tag = 'scoped memory for tpu_custom_call.1']
    #allocation5 [shape = 'u8[8192]{0}', space=vmem, size = 0x2000, scoped, tag = 'input window, operand 1, single buffered']
    #allocation6 [shape = 's32[1]{0}', space=sflag, size = 0x4, scoped, tag = 'scoped memory for tpu_custom_call.1']
    #allocation7 [shape = 'u8[4096]{0}', space=vmem, size = 0x1000, scoped, tag = 'output window, operand 0, single buffered']
    %7 = vsyncpa [#allocation3], 0
    %8 = vsyncpa [#allocation6], 0
    %9 = vsyncpa [#allocation4], 0
    // Predicated region
    $region2: #{tpu_custom_call.1} parent=1 // pred_check
      _
    $region3: #{tpu_custom_call.1} parent=1 // pred_check_branch
      %11 = sbr.rel (0) target = $region5
    $region4: #{tpu_custom_call.1} parent=1 // pred_region
      %s13 = ssub.s32 128, 128
      %14 = vsyncadd [#allocation3], %s13
      %s16 = sshll.u32 [#allocation2], 4
      %s17 = int_to_ptr.vmem [resolvable:$true] %s16
      %19 = dma.hbm_to_vmem [thread:$0]  %s0, 128, %s17, [#allocation3]
    $region5: #{tpu_custom_call.1} parent=1 // pred_fallthru
      _
    // Predicated region
    $region6: #{tpu_custom_call.1} parent=1 // pred_check
      _
    $region7: #{tpu_custom_call.1} parent=1 // pred_check_branch
      %21 = sbr.rel (0) target = $region9
    $region8: #{tpu_custom_call.1} parent=1 // pred_region
      %s23 = ssub.s32 256, 256
      %24 = vsyncadd [#allocation6], %s23
      %s25 = sshll.u32 [#allocation5], 4
      %s26 = int_to_ptr.vmem [resolvable:$true] %s25
      %31 = dma.hbm_to_vmem [thread:$0]  %s1, 256, %s26, [#allocation6], 128, 128, 8
    $region9: #{tpu_custom_call.1} parent=1 // pred_fallthru
      _
    // Predicated region
    $region10: #{tpu_custom_call.1} parent=1 // pred_check
      _
    $region11: #{tpu_custom_call.1} parent=1 // pred_check_branch
      %33 = sbr.rel (0) target = $region13
    $region12: #{tpu_custom_call.1} parent=1 // pred_region
      %34 = dma.done [#allocation3], 128
    $region13: #{tpu_custom_call.1} parent=1 // pred_fallthru
      _
    // Predicated region
    $region14: #{tpu_custom_call.1} parent=1 // pred_check
      _
    $region15: #{tpu_custom_call.1} parent=1 // pred_check_branch
      %36 = sbr.rel (0) target = $region17
    $region16: #{tpu_custom_call.1} parent=1 // pred_region
      %37 = dma.done [#allocation6], 256
    $region17: #{tpu_custom_call.1} parent=1 // pred_fallthru
      _
    %v38 = vld [vmem:[#allocation2] sm:$0xff]
    %v39 = vld [vmem:[#allocation5] sm:$0xff]
    %v40 = vld [vmem:[#allocation5 + $0x8] sm:$0xff]
    %vm41 = vcmask 130048
    %v43 = vsel %vm41, %v38, 0
    %45 = vmatprep.subr.mxu0 0.0
    %46 = vmatpush1.msra.mxu0 %v39
    %47 = vmatprep.subr.mxu0 0.0
    %48 = vmatpush1.msra.mxu0 %v40
    %49 = vmatprep.subr.mxu0 0.0
    %50 = vmatpush1.msra.mxu0 0.0
    %51 = vmatprep.subr.mxu0 0.0
    %52 = vmatpush1.msra.mxu0 0.0
    %53 = vmatprep.subr.mxu0 0.0
    %54 = vmatpush1.msra.mxu0 0.0
    %55 = vmatprep.subr.mxu0 0.0
    %56 = vmatpush1.msra.mxu0 0.0
    %57 = vmatprep.subr.mxu0 0.0
    %58 = vmatpush1.msra.mxu0 0.0
    %59 = vmatprep.subr.mxu0 0.0
    %60 = vmatpush1.msra.mxu0 0.0
    %61 = vmatprep.subr.mxu0 0.0
    %62 = vmatpush1.msra.mxu0 0.0
    %63 = vmatprep.subr.mxu0 0.0
    %64 = vmatpush1.msra.mxu0 0.0
    %65 = vmatprep.subr.mxu0 0.0
    %66 = vmatpush1.msra.mxu0 0.0
    %67 = vmatprep.subr.mxu0 0.0
    %68 = vmatpush1.msra.mxu0 0.0
    %69 = vmatprep.subr.mxu0 0.0
    %70 = vmatpush1.msra.mxu0 0.0
    %71 = vmatprep.subr.mxu0 0.0
    %72 = vmatpush1.msra.mxu0 0.0
    %73 = vmatprep.subr.mxu0 0.0
    %74 = vmatpush1.msra.mxu0 0.0
    %75 = vmatprep.subr.mxu0 0.0
    %76 = vmatpush1.msra.mxu0 0.0
    %77 = vmatprep.subr.mxu0 0.0
    %78 = vmatpush1.msra.mxu0 0.0
    %79 = vmatprep.subr.mxu0 0.0
    %80 = vmatpush1.msra.mxu0 0.0
    %81 = vmatprep.subr.mxu0 0.0
    %82 = vmatpush1.msra.mxu0 0.0
    %83 = vmatprep.subr.mxu0 0.0
    %84 = vmatpush1.msra.mxu0 0.0
    %85 = vmatprep.subr.mxu0 0.0
    %86 = vmatpush1.msra.mxu0 0.0
    %87 = vmatprep.subr.mxu0 0.0
    %88 = vmatpush1.msra.mxu0 0.0
    %89 = vmatprep.subr.mxu0 0.0
    %90 = vmatpush1.msra.mxu0 0.0
    %91 = vmatprep.subr.mxu0 0.0
    %92 = vmatpush1.msra.mxu0 0.0
    %93 = vmatprep.subr.mxu0 0.0
    %94 = vmatpush1.msra.mxu0 0.0
    %95 = vmatprep.subr.mxu0 0.0
    %96 = vmatpush1.msra.mxu0 0.0
    %97 = vmatprep.subr.mxu0 0.0
    %98 = vmatpush1.msra.mxu0 0.0
    %99 = vmatprep.subr.mxu0 0.0
    %100 = vmatpush1.msra.mxu0 0.0
    %101 = vmatprep.subr.mxu0 0.0
    %102 = vmatpush1.msra.mxu0 0.0
    %103 = vmatprep.subr.mxu0 0.0
    %104 = vmatpush1.msra.mxu0 0.0
    %105 = vmatprep.subr.mxu0 0.0
    %106 = vmatpush1.msra.mxu0 0.0
    %107 = vmatprep.subr.mxu0 0.0
    %108 = vmatpush1.msra.mxu0 0.0
    %109 = vmatprep.mubr.f32.mxu0 0.0
    %110 = vmatmul.mubr.f32.gmra.mrb[0].mxu0 %v43
    %v111 = vpop.f32.mrb[0].mxu0
    %v112 = vadd.f32 0.0, %v111
    %v113 = vpop.f32.mrb[0].mxu0
    %114 = vdwg.mxu0
    %115 = vst [vmem:[#allocation7] sm:$0xff] %v112
    // Predicated region
    $region18: #{tpu_custom_call.1} parent=1 // pred_check
      _
    $region19: #{tpu_custom_call.1} parent=1 // pred_check_branch
      %117 = sbr.rel (0) target = $region21
    $region20: #{tpu_custom_call.1} parent=1 // pred_region
      %s119 = ssub.s32 128, 128
      %120 = vsyncadd [#allocation4], %s119
      %s122 = sshll.u32 [#allocation7], 4
      %s123 = int_to_ptr.vmem [resolvable:$true] %s122
      %125 = dma.vmem_to_hbm [thread:$0]  %s123, 128, %s2, [#allocation4]
    $region21: #{tpu_custom_call.1} parent=1 // pred_fallthru
      _
    // Predicated region
    $region22: #{tpu_custom_call.1} parent=1 // pred_check
      _
    $region23: #{tpu_custom_call.1} parent=1 // pred_check_branch
      %127 = sbr.rel (0) target = $region25
    $region24: #{tpu_custom_call.1} parent=1 // pred_region
      %128 = dma.done [#allocation4], 128
    $region25: #{tpu_custom_call.1} parent=1 // pred_fallthru
      _
    %129 = vsyncpa [#allocation3], 1
    %130 = vsyncpa [#allocation6], 1
    %131 = vsyncpa [#allocation4], 1

</llo_original>
